<compile_context>
chip_gen: v5e
topology: v5e:2x2
jax: 0.10.0
libtpu: 0.0.40
codegen_flags: <defaults>
</compile_context>

<pallas_src>
import jax
import jax.numpy as jnp
from jax.experimental import pallas as pl
from jax.experimental.pallas import tpu as pltpu


def _round_up(x, m):
    return (x + m - 1) // m * m


def _tpu_vmem_bytes():
    try:
        return int(pltpu.get_tpu_info().vmem_capacity_bytes)
    except Exception:
        return 64 * 1024 * 1024          # conservative (v7x per-TC VMEM)


def _derive_budget(block_rows):
    """Per-generation VMEM budget + default row-tile size.  [R5/R8]"""
    phys = _tpu_vmem_bytes()
    vmem_limit = min(int(phys * 3 // 4), 100 * 1024 * 1024)
    if block_rows is None:
        block_rows = 512 if phys <= 64 * 1024 * 1024 else 1024
    return block_rows, vmem_limit


# --------------------------------------------------------------------------- #
# Kernel 1: conv-as-GEMM row tile (+ optional fused BN+ReLU on the input)
#           + per-tile partial channel stats (sum / sum-of-squares)
# --------------------------------------------------------------------------- #
def _make_conv1x1_stats_kernel(fuse_act, tm, valid_rows, mdt):
    """fuse_act:  apply x = relu(x*scale + shift) before the GEMM (previous
                  stage's BatchNorm+ReLU folded in).                     [R1]
    valid_rows:   if not None, zero rows >= valid_rows before the GEMM so
                  zero-padded ragged rows cannot pollute the BN stats.   [R7]
    """
    def kernel(*refs):
        if fuse_act:
            x_ref, scale_ref, shift_ref, w_ref, o_ref, sum_ref, ssq_ref = refs
            x = jnp.maximum(x_ref[...] * scale_ref[...] + shift_ref[...], 0.0)
            if valid_rows is not None:
                row = (pl.program_id(0) * tm
                       + jax.lax.broadcasted_iota(jnp.int32, (tm, 1), 0))
                x = jnp.where(row < valid_rows, x, 0.0)
        else:
            x_ref, w_ref, o_ref, sum_ref, ssq_ref = refs
            x = x_ref[...]
        y = jnp.dot(x.astype(mdt), w_ref[...].astype(mdt),
                    preferred_element_type=jnp.float32)
        o_ref[...] = y
        # per-tile partial stats -> no carried accumulator, grid stays parallel [R3]
        sum_ref[0] = jnp.sum(y, axis=0, keepdims=True)
        ssq_ref[0] = jnp.sum(y * y, axis=0, keepdims=True)
    return kernel


def _conv1x1_stats_pass(x2d, w2d, *, block_rows, vmem_limit,
                        scale=None, shift=None, matmul_dtype=jnp.float32):
    """1x1 conv as GEMM over row tiles.  Returns (out[rows,C], sum[1,C], ssq[1,C])."""
    rows, kdim = x2d.shape
    kdim_w, cout = w2d.shape
    assert kdim == kdim_w
    tm = _round_up(min(block_rows, _round_up(rows, 8)), 8)
    rows_p = _round_up(rows, tm)
    fuse = scale is not None
    needs_pad = rows_p != rows            # pad fallback only when needed [R7]
    if needs_pad:
        x2d = jnp.pad(x2d, ((0, rows_p - rows), (0, 0)))
    num_tiles = rows_p // tm

    kernel = _make_conv1x1_stats_kernel(
        fuse, tm, rows if (needs_pad and fuse) else None, matmul_dtype)

    in_specs = [pl.BlockSpec((tm, kdim), lambda i: (i, 0))]
    args = [x2d.astype(jnp.float32)]
    if fuse:
        in_specs += [pl.BlockSpec((1, kdim), lambda i: (0, 0)),
                     pl.BlockSpec((1, kdim), lambda i: (0, 0))]
        args += [scale, shift]
    in_specs.append(pl.BlockSpec((kdim, cout), lambda i: (0, 0)))   # resident weights
    args.append(w2d.astype(jnp.float32))

    out, ps, pq = pl.pallas_call(
        kernel,
        out_shape=(
            jax.ShapeDtypeStruct((rows_p, cout), jnp.float32),
            jax.ShapeDtypeStruct((num_tiles, 1, cout), jnp.float32),
            jax.ShapeDtypeStruct((num_tiles, 1, cout), jnp.float32),
        ),
        grid_spec=pltpu.PrefetchScalarGridSpec(
            num_scalar_prefetch=0,
            grid=(num_tiles,),
            in_specs=in_specs,
            out_specs=[
                pl.BlockSpec((tm, cout), lambda i: (i, 0)),
                pl.BlockSpec((1, 1, cout), lambda i: (i, 0, 0)),
                pl.BlockSpec((1, 1, cout), lambda i: (i, 0, 0)),
            ],
        ),
        compiler_params=pltpu.CompilerParams(
            dimension_semantics=("parallel",),      # [R3]
            vmem_limit_bytes=vmem_limit,
        ),
    )(*args)

    s = jnp.sum(ps, axis=0)     # tiny (num_tiles,1,C) -> (1,C) reduce in XLA
    q = jnp.sum(pq, axis=0)
    if needs_pad:
        out = out[:rows]
    return out, s, q


# --------------------------------------------------------------------------- #
# Kernel 2: per-image 3x3 conv with fused BN1+ReLU on the input, taps in-kernel
# --------------------------------------------------------------------------- #
def _make_conv3x3_stats_kernel(hw, img_w, pad_rows, mdt):
    """The (HW, Cin) activation tile is staged into a VMEM scratch with
    `pad_rows` halo rows on each side; tap (kh, kw) is a row-shifted slice at
    offset (kh-1)*img_w + (kw-1), matmul'd against its (Cin, Cout) weight slab
    and masked with the precomputed in-image mask (== zero-padding semantics).
    Halo rows are never zeroed: every out-of-image read is killed by the mask
    (jnp.where, so garbage/NaN cannot leak).                              [R2]
    """
    def kernel(y_ref, scale_ref, shift_ref, w_ref, mask_ref,
               o_ref, sum_ref, ssq_ref, zbuf):
        # fused BN1 + ReLU of the previous stage                          [R1]
        z = jnp.maximum(y_ref[0] * scale_ref[...] + shift_ref[...], 0.0)
        zbuf[pl.ds(pad_rows, hw), :] = z.astype(mdt)

        cout = w_ref.shape[2]
        acc = jnp.zeros((hw, cout), jnp.float32)
        for kh in range(3):
            for kw in range(3):
                t = kh * 3 + kw
                off = (kh - 1) * img_w + (kw - 1)
                xt = zbuf[pl.ds(pad_rows + off, hw), :]
                xt = jnp.where(mask_ref[t] > 0.5, xt, jnp.zeros_like(xt))
                acc = acc + jnp.dot(xt, w_ref[t].astype(mdt),
                                    preferred_element_type=jnp.float32)
        o_ref[0] = acc
        sum_ref[0] = jnp.sum(acc, axis=0, keepdims=True)
        ssq_ref[0] = jnp.sum(acc * acc, axis=0, keepdims=True)
    return kernel


def _conv3x3_stats_pass(y_img, scale, shift, w9, mask, *, img_w, vmem_limit,
                        matmul_dtype=jnp.float32):
    """y_img: (N, H*W, Cin) raw previous-conv output.  Grid over N (parallel)."""
    n, hw, cin = y_img.shape
    cout = w9.shape[2]
    pad_rows = _round_up(img_w + 1, 8)         # 8-aligned center placement
    kernel = _make_conv3x3_stats_kernel(hw, img_w, pad_rows, matmul_dtype)

    out, ps, pq = pl.pallas_call(
        kernel,
        out_shape=(
            jax.ShapeDtypeStruct((n, hw, cout), jnp.float32),
            jax.ShapeDtypeStruct((n, 1, cout), jnp.float32),
            jax.ShapeDtypeStruct((n, 1, cout), jnp.float32),
        ),
        grid_spec=pltpu.PrefetchScalarGridSpec(
            num_scalar_prefetch=0,
            grid=(n,),
            in_specs=[
                pl.BlockSpec((1, hw, cin), lambda i: (i, 0, 0)),
                pl.BlockSpec((1, cin), lambda i: (0, 0)),        # resident
                pl.BlockSpec((1, cin), lambda i: (0, 0)),        # resident
                pl.BlockSpec((9, cin, cout), lambda i: (0, 0, 0)),  # resident
                pl.BlockSpec((9, hw, 1), lambda i: (0, 0, 0)),      # resident
            ],
            out_specs=[
                pl.BlockSpec((1, hw, cout), lambda i: (i, 0, 0)),
                pl.BlockSpec((1, 1, cout), lambda i: (i, 0, 0)),
                pl.BlockSpec((1, 1, cout), lambda i: (i, 0, 0)),
            ],
            scratch_shapes=[pltpu.VMEM((hw + 2 * pad_rows, cin), matmul_dtype)],
        ),
        compiler_params=pltpu.CompilerParams(
            dimension_semantics=("parallel",),
            vmem_limit_bytes=vmem_limit,
        ),
    )(y_img, scale, shift, w9.astype(jnp.float32), mask)

    return out, jnp.sum(ps, axis=0), jnp.sum(pq, axis=0)


# --------------------------------------------------------------------------- #
# Kernel 3: final stage -- BN(main) + BN(residual) + add + ReLU, all fused
# --------------------------------------------------------------------------- #
def _bn_add_relu_kernel(y_ref, r_ref, sy_ref, hy_ref, sr_ref, hr_ref, o_ref):
    y = y_ref[...] * sy_ref[...] + hy_ref[...]
    r = r_ref[...] * sr_ref[...] + hr_ref[...]
    o_ref[...] = jnp.maximum(y + r, 0.0)


def _bn_add_relu_pass(y2d, r2d, scale_y, shift_y, scale_r, shift_r, *,
                      block_rows, vmem_limit):
    rows, c = y2d.shape
    tm = _round_up(min(block_rows, _round_up(rows, 8)), 8)
    rows_p = _round_up(rows, tm)
    needs_pad = rows_p != rows
    if needs_pad:
        pad = ((0, rows_p - rows), (0, 0))
        y2d = jnp.pad(y2d, pad)
        r2d = jnp.pad(r2d, pad)
    num_tiles = rows_p // tm

    out = pl.pallas_call(
        _bn_add_relu_kernel,
        out_shape=jax.ShapeDtypeStruct((rows_p, c), jnp.float32),
        grid_spec=pltpu.PrefetchScalarGridSpec(
            num_scalar_prefetch=0,
            grid=(num_tiles,),
            in_specs=[
                pl.BlockSpec((tm, c), lambda i: (i, 0)),
                pl.BlockSpec((tm, c), lambda i: (i, 0)),
                pl.BlockSpec((1, c), lambda i: (0, 0)),
                pl.BlockSpec((1, c), lambda i: (0, 0)),
                pl.BlockSpec((1, c), lambda i: (0, 0)),
                pl.BlockSpec((1, c), lambda i: (0, 0)),
            ],
            out_specs=pl.BlockSpec((tm, c), lambda i: (i, 0)),
        ),
        compiler_params=pltpu.CompilerParams(
            dimension_semantics=("parallel",),
            vmem_limit_bytes=vmem_limit,
        ),
    )(y2d, r2d, scale_y, shift_y, scale_r, shift_r)
    return out[:rows] if needs_pad else out


# --------------------------------------------------------------------------- #
# Wrapper glue
# --------------------------------------------------------------------------- #
def _bn_scale_shift(s, q, gamma, beta, rows, eps):
    """Fold training-mode BN (batch stats, biased var) into one scale/shift."""
    mean = s[0] / rows
    var = jnp.maximum(q[0] / rows - mean * mean, 0.0)
    scale = gamma.astype(jnp.float32) * jax.lax.rsqrt(var + eps)
    shift = beta.astype(jnp.float32) - mean * scale
    return scale.reshape(1, -1), shift.reshape(1, -1)


def _conv3x3_masks(h, w):
    """(9, H*W, 1) float mask: 1 where tap (kh,kw) stays inside the image."""
    idx = jnp.arange(h * w, dtype=jnp.int32)
    hi = idx // w
    wi = idx % w
    ms = []
    for kh in range(3):
        for kw in range(3):
            dh, dw = kh - 1, kw - 1
            ms.append((hi + dh >= 0) & (hi + dh < h)
                      & (wi + dw >= 0) & (wi + dw < w))
    return jnp.stack(ms, axis=0).astype(jnp.float32).reshape(9, h * w, 1)


def bottleblock_forward(x_nchw, params, *, stride=1, hasdownsample=False,
                        eps=1e-5, block_rows=None, matmul_dtype=jnp.float32):
    """Forward pass of BottleBlock (all BatchNorms in training mode, fresh stats)."""
    N, Cin, H, W = x_nchw.shape
    w1 = params["conv1"]    # (Mid, Cin, 1, 1)
    w2 = params["conv2"]    # (Mid, Mid, 3, 3)
    w3 = params["conv3"]    # (Cout, Mid, 1, 1)
    g1, b1 = params["bn1"]
    g2, b2 = params["bn2"]
    g3, b3 = params["bn3"]
    Mid = w1.shape[0]
    Cout = w3.shape[0]

    block_rows, vmem_limit = _derive_budget(block_rows)

    Ho = (H - 1) // stride + 1
    Wo = (W - 1) // stride + 1
    rows = N * Ho * Wo
    HW = Ho * Wo

    # Boundary layout glue (would be hoisted to the model boundary in a full
    # network so activations stay NHWC across blocks).               [R11]
    x_nhwc = jnp.transpose(x_nchw, (0, 2, 3, 1)).astype(jnp.float32)
    if stride != 1:
        x_nhwc = x_nhwc[:, ::stride, ::stride, :]
    xs = x_nhwc.reshape(rows, Cin)

    common = dict(block_rows=block_rows, vmem_limit=vmem_limit,
                  matmul_dtype=matmul_dtype)

    # --- residual branch ---
    if hasdownsample:
        wres = params["convres"]           # (Cout, Cin, 1, 1)
        gres, bres = params["bnres"]
        r_raw, rs, rq = _conv1x1_stats_pass(xs, wres.reshape(Cout, Cin).T, **common)
        scale_r, shift_r = _bn_scale_shift(rs, rq, gres, bres, rows, eps)
    else:
        assert Cin == Cout and stride == 1, \
            "identity residual requires inplanes == outplanes and stride == 1"
        r_raw = xs
        scale_r = jnp.ones((1, Cout), jnp.float32)
        shift_r = jnp.zeros((1, Cout), jnp.float32)

    # --- stage 1: conv1x1 + stats (BN1+ReLU is fused into stage 2) ---
    y1_raw, s1, q1 = _conv1x1_stats_pass(xs, w1.reshape(Mid, Cin).T, **common)
    sc1, sh1 = _bn_scale_shift(s1, q1, g1, b1, rows, eps)

    # --- stage 2: [BN1+ReLU ->] conv3x3 in-kernel (no HBM im2col)  [R1][R2] ---
    y1_img = y1_raw.reshape(N, HW, Mid)                       # free reshape
    w2_f = jnp.transpose(w2, (2, 3, 1, 0)).reshape(9, Mid, Mid)
    mask = _conv3x3_masks(Ho, Wo)
    y2_img, s2, q2 = _conv3x3_stats_pass(
        y1_img, sc1, sh1, w2_f, mask,
        img_w=Wo, vmem_limit=vmem_limit, matmul_dtype=matmul_dtype)
    sc2, sh2 = _bn_scale_shift(s2, q2, g2, b2, rows, eps)
    y2_raw = y2_img.reshape(rows, Mid)                        # free reshape

    # --- stage 3: [BN2+ReLU ->] conv1x1 + stats, fused             [R1] ---
    y3_raw, s3, q3 = _conv1x1_stats_pass(y2_raw, w3.reshape(Cout, Mid).T,
                                         scale=sc2, shift=sh2, **common)
    sc3, sh3 = _bn_scale_shift(s3, q3, g3, b3, rows, eps)

    # --- final: BN3 + BN(res) + add + ReLU, fused elementwise ---
    out = _bn_add_relu_pass(y3_raw, r_raw, sc3, sh3, scale_r, shift_r,
                            block_rows=block_rows, vmem_limit=vmem_limit)
    return jnp.transpose(out.reshape(N, Ho, Wo, Cout), (0, 3, 1, 2))


# --------------------------------------------------------------------------- #
# Pure-JAX reference (mirrors the PyTorch module in train mode)
# --------------------------------------------------------------------------- #
def bottleblock_ref(x, params, *, stride=1, hasdownsample=False, eps=1e-5):
    def conv(x, w, s, pad):
        return jax.lax.conv_general_dilated(
            x, w, (s, s), ((pad, pad), (pad, pad)),
            dimension_numbers=("NCHW", "OIHW", "NCHW"))

    def bn(y, gb):
        gamma, beta = gb
        mean = y.mean(axis=(0, 2, 3), keepdims=True)
        var = ((y - mean) ** 2).mean(axis=(0, 2, 3), keepdims=True)
        yn = (y - mean) * jax.lax.rsqrt(var + eps)
        return yn * gamma.reshape(1, -1, 1, 1) + beta.reshape(1, -1, 1, 1)

    identity = x
    if hasdownsample:
        identity = bn(conv(x, params["convres"], stride, 0), params["bnres"])
    y = jnp.maximum(bn(conv(x, params["conv1"], stride, 0), params["bn1"]), 0.0)
    y = jnp.maximum(bn(conv(y, params["conv2"], 1, 1), params["bn2"]), 0.0)
    y = bn(conv(y, params["conv3"], 1, 0), params["bn3"])
    return jnp.maximum(y + identity, 0.0)


if __name__ == "__main__":
    key = jax.random.PRNGKey(0)
    ks = jax.random.split(key, 24)

    def mk_conv(k, o, i, kh, kw):
        return 0.2 * jax.random.normal(k, (o, i, kh, kw), dtype=jnp.float32)

    def mk_bn(kg, kb, c):
        return (1.0 + 0.1 * jax.random.normal(kg, (c,), dtype=jnp.float32),
                0.1 * jax.random.normal(kb, (c,), dtype=jnp.float32))

    # --- Case A: downsample bottleneck, stride 1, inplanes=4 -> outplanes=16 ---
    N, Cin, H, W = 2, 4, 16, 16
    Cout = 16
    Mid = Cout // 4
    x = jax.random.normal(ks[0], (N, Cin, H, W), dtype=jnp.float32)
    params = {
        "convres": mk_conv(ks[1], Cout, Cin, 1, 1),
        "bnres": mk_bn(ks[2], ks[3], Cout),
        "conv1": mk_conv(ks[4], Mid, Cin, 1, 1),
        "bn1": mk_bn(ks[5], ks[6], Mid),
        "conv2": mk_conv(ks[7], Mid, Mid, 3, 3),
        "bn2": mk_bn(ks[8], ks[9], Mid),
        "conv3": mk_conv(ks[10], Cout, Mid, 1, 1),
        "bn3": mk_bn(ks[11], ks[12], Cout),
    }
    out = bottleblock_forward(x, params, stride=1, hasdownsample=True)
    out = jax.block_until_ready(out)
    ref = bottleblock_ref(x, params, stride=1, hasdownsample=True)
    assert out.shape == ref.shape == (N, Cout, H, W), (out.shape, ref.shape)
    err_a = float(jnp.max(jnp.abs(out - ref)))
    assert jnp.allclose(out, ref, rtol=1e-4, atol=1e-4), err_a

    # --- Case B: identity residual; block_rows chosen NOT to divide rows so the
    #     ragged pad fallback (incl. the in-kernel row mask of the fused stage 3)
    #     is exercised. The default block_rows avoids padding at these shapes. ---
    Cin2 = Cout
    x2 = jax.random.normal(ks[13], (N, Cin2, H, W), dtype=jnp.float32)
    params2 = {
        "conv1": mk_conv(ks[14], Mid, Cin2, 1, 1),
        "bn1": params["bn1"],
        "conv2": params["conv2"],
        "bn2": params["bn2"],
        "conv3": params["conv3"],
        "bn3": params["bn3"],
    }
    out2 = bottleblock_forward(x2, params2, stride=1, hasdownsample=False,
                               block_rows=192)
    out2 = jax.block_until_ready(out2)
    ref2 = bottleblock_ref(x2, params2, stride=1, hasdownsample=False)
    err_b = float(jnp.max(jnp.abs(out2 - ref2)))
    assert jnp.allclose(out2, ref2, rtol=1e-4, atol=1e-4), err_b

    # --- Case C: stride-2 downsample bottleneck (inplanes=8 -> outplanes=16) ---
    Cin3 = 8
    x3 = jax.random.normal(ks[15], (N, Cin3, H, W), dtype=jnp.float32)
    params3 = {
        "convres": mk_conv(ks[16], Cout, Cin3, 1, 1),
        "bnres": params["bnres"],
        "conv1": mk_conv(ks[17], Mid, Cin3, 1, 1),
        "bn1": params["bn1"],
        "conv2": params["conv2"],
        "bn2": params["bn2"],
        "conv3": params["conv3"],
        "bn3": params["bn3"],
    }
    out3 = bottleblock_forward(x3, params3, stride=2, hasdownsample=True)
    out3 = jax.block_until_ready(out3)
    ref3 = bottleblock_ref(x3, params3, stride=2, hasdownsample=True)
    assert out3.shape == ref3.shape == (N, Cout, H // 2, W // 2)
    err_c = float(jnp.max(jnp.abs(out3 - ref3)))
    assert jnp.allclose(out3, ref3, rtol=1e-4, atol=1e-4), err_c

    print("KERNEL_OK")
</pallas_src>

<mosaic_0001>
module attributes {stable_mosaic.version = 11 : i64} {
  func.func @kernel(%arg0: i32, %arg1: memref<512x4xf32, #tpu.memory_space<vmem>>, %arg2: memref<4x16xf32, #tpu.memory_space<vmem>>, %arg3: memref<512x16xf32, #tpu.memory_space<vmem>>, %arg4: memref<1x1x16xf32, #tpu.memory_space<vmem>>, %arg5: memref<1x1x16xf32, #tpu.memory_space<vmem>>) attributes {dimension_semantics = [#tpu.dimension_semantics<parallel>], iteration_bounds = array<i64: 1>, scalar_prefetch = 0 : i64, scratch_operands = 0 : i64, tpu.core_type = #tpu.core_type<tc>, window_params = [{transform_indices = @transform_0, window_bounds = array<i64: 512, 4>}, {pipeline_mode = #tpu.pipeline_mode<synchronous>, transform_indices = @transform_1, window_bounds = array<i64: 4, 16>}, {transform_indices = @transform_2, window_bounds = array<i64: 512, 16>}, {transform_indices = @transform_3, window_bounds = array<i64: 1, 1, 16>}, {transform_indices = @transform_4, window_bounds = array<i64: 1, 1, 16>}]} {
    %c0 = arith.constant 0 : index
    %c0_0 = arith.constant 0 : index
    %0 = vector.load %arg1[%c0, %c0_0] : memref<512x4xf32, #tpu.memory_space<vmem>>, vector<512x4xf32>
    %c0_1 = arith.constant 0 : index
    %c0_2 = arith.constant 0 : index
    %1 = vector.load %arg2[%c0_1, %c0_2] : memref<4x16xf32, #tpu.memory_space<vmem>>, vector<4x16xf32>
    %cst = arith.constant dense<0.000000e+00> : vector<512x16xf32>
    %2 = tpu.matmul %0, %1, %cst {dimension_numbers = #tpu.dot_dimension_numbers<[1], [0], [0], [1], [0, 0, 1, 1], [], []>} : vector<512x4xf32>, vector<4x16xf32>, vector<512x16xf32> -> vector<512x16xf32>
    %c0_3 = arith.constant 0 : index
    %c0_4 = arith.constant 0 : index
    %3 = vector.load %arg3[%c0_3, %c0_4] : memref<512x16xf32, #tpu.memory_space<vmem>>, vector<512x16xf32>
    tpu.vector_store %arg3[%c0_3, %c0_4], %2 {strides = array<i32>} : memref<512x16xf32, #tpu.memory_space<vmem>>, vector<512x16xf32>,
    %cst_5 = arith.constant dense<0.000000e+00> : vector<16xf32>
    %4 = vector.multi_reduction <add>, %2, %cst_5 [0] : vector<512x16xf32> to vector<16xf32>
    %5 = vector.shape_cast %4 : vector<16xf32> to vector<1x16xf32>
    %c0_6 = arith.constant 0 : index
    %c0_7 = arith.constant 0 : index
    %c0_8 = arith.constant 0 : index
    %6 = vector.load %arg4[%c0_6, %c0_7, %c0_8] : memref<1x1x16xf32, #tpu.memory_space<vmem>>, vector<1x1x16xf32>
    %7 = vector.shape_cast %6 : vector<1x1x16xf32> to vector<1x16xf32>
    %8 = vector.shape_cast %5 : vector<1x16xf32> to vector<1x1x16xf32>
    tpu.vector_store %arg4[%c0_6, %c0_7, %c0_8], %8 {strides = array<i32>} : memref<1x1x16xf32, #tpu.memory_space<vmem>>, vector<1x1x16xf32>,
    %9 = arith.mulf %2, %2 : vector<512x16xf32>
    %cst_9 = arith.constant dense<0.000000e+00> : vector<16xf32>
    %10 = vector.multi_reduction <add>, %9, %cst_9 [0] : vector<512x16xf32> to vector<16xf32>
    %11 = vector.shape_cast %10 : vector<16xf32> to vector<1x16xf32>
    %c0_10 = arith.constant 0 : index
    %c0_11 = arith.constant 0 : index
    %c0_12 = arith.constant 0 : index
    %12 = vector.load %arg5[%c0_10, %c0_11, %c0_12] : memref<1x1x16xf32, #tpu.memory_space<vmem>>, vector<1x1x16xf32>
    %13 = vector.shape_cast %12 : vector<1x1x16xf32> to vector<1x16xf32>
    %14 = vector.shape_cast %11 : vector<1x16xf32> to vector<1x1x16xf32>
    tpu.vector_store %arg5[%c0_10, %c0_11, %c0_12], %14 {strides = array<i32>} : memref<1x1x16xf32, #tpu.memory_space<vmem>>, vector<1x1x16xf32>,
    return
  }
  func.func @transform_0(%arg0: i32) -> (i32, i32) {
    %c0_i32 = arith.constant 0 : i32
    %c0_i32_0 = arith.constant 0 : i32
    return %arg0, %c0_i32 : i32, i32
  }
  func.func @transform_1(%arg0: i32) -> (i32, i32) {
    %c0_i32 = arith.constant 0 : i32
    %c0_i32_0 = arith.constant 0 : i32
    %c0_i32_1 = arith.constant 0 : i32
    return %c0_i32, %c0_i32_0 : i32, i32
  }
  func.func @transform_2(%arg0: i32) -> (i32, i32) {
    %c0_i32 = arith.constant 0 : i32
    %c0_i32_0 = arith.constant 0 : i32
    return %arg0, %c0_i32 : i32, i32
  }
  func.func @transform_3(%arg0: i32) -> (i32, i32, i32) {
    %c0_i32 = arith.constant 0 : i32
    %c0_i32_0 = arith.constant 0 : i32
    %c0_i32_1 = arith.constant 0 : i32
    return %arg0, %c0_i32, %c0_i32_0 : i32, i32, i32
  }
  func.func @transform_4(%arg0: i32) -> (i32, i32, i32) {
    %c0_i32 = arith.constant 0 : i32
    %c0_i32_0 = arith.constant 0 : i32
    %c0_i32_1 = arith.constant 0 : i32
    return %arg0, %c0_i32, %c0_i32_0 : i32, i32, i32
  }
}

</mosaic_0001>

<llo_original>
// kernel: tpu_custom_call.1
$region0: #{tpu_custom_call.1}
  #allocation0 [shape = 'u32[]', space=smem, size = 0x4, offset = 0x4, fixed_abs, tag = 'smem constant byte address 0x4 - core index']
  #allocation1 [shape = 'u32[72,128]{1,0:T(1,128)}', space=vmem, size = 0x9000, scoped, tag = 'internal scratch']
  %s0 = inlined_call_operand.vmem [shape: f32[512,4], index: 0, kind: input, shape index: {}]
  %s1 = inlined_call_operand.vmem [shape: f32[4,16], index: 1, kind: input, shape index: {}]
  %s2 = inlined_call_operand.vmem [shape: f32[512,16], index: 2, kind: output, shape index: {0}]
  %s3 = inlined_call_operand.hbm [shape: f32[1,1,16], index: 3, kind: output, shape index: {1}]
  %s4 = inlined_call_operand.hbm [shape: f32[1,1,16], index: 4, kind: output, shape index: {2}]
  %5 = xla_tuple %s2, %s3, %s4
  %s6 = sld [smem:[#allocation0]]
  $region34: #{tpu_custom_call.1} parent=0
    _
  %s8 = ssub.s32 1, %s6
  %s9 = scalar_select 0, %s8, %s6
  $region1: #{tpu_custom_call.1} parent=0
    #allocation2 [shape = 'u8[512]{0}', space=vmem, size = 0x400, scoped, tag = 'output window, operand 1, single buffered']
    #allocation3 [shape = 's32[1]{0}', space=sflag, size = 0x4, scoped, tag = 'scoped memory for tpu_custom_call.1']
    #allocation4 [shape = 'u8[512]{0}', space=vmem, size = 0x400, scoped, tag = 'output window, operand 2, single buffered']
    #allocation5 [shape = 's32[1]{0}', space=sflag, size = 0x4, scoped, tag = 'scoped memory for tpu_custom_call.1']
    %10 = vsyncpa [#allocation3], 0
    %11 = vsyncpa [#allocation5], 0
    // Predicated region
    $region2: #{tpu_custom_call.1} parent=1 // pred_check
      _
    $region3: #{tpu_custom_call.1} parent=1 // pred_check_branch
      %13 = sbr.rel (0) target = $region5
    $region4: #{tpu_custom_call.1} parent=1 // pred_region
      _
    $region5: #{tpu_custom_call.1} parent=1 // pred_fallthru
      _
    // Predicated region
    $region6: #{tpu_custom_call.1} parent=1 // pred_check
      _
    $region7: #{tpu_custom_call.1} parent=1 // pred_check_branch
      %15 = sbr.rel (0) target = $region9
    $region8: #{tpu_custom_call.1} parent=1 // pred_region
      _
    $region9: #{tpu_custom_call.1} parent=1 // pred_fallthru
      _
    %v16 = vld [vmem:[%s0] sm:$0xff]
    %v17 = vld [vmem:[%s0 + $0x8] sm:$0xff]
    %v18 = vld [vmem:[%s0 + $0x10] sm:$0xff]
    %v19 = vld [vmem:[%s0 + $0x18] sm:$0xff]
    %v20 = vld [vmem:[%s0 + $0x20] sm:$0xff]
    %v21 = vld [vmem:[%s0 + $0x28] sm:$0xff]
    %v22 = vld [vmem:[%s0 + $0x30] sm:$0xff]
    %v23 = vld [vmem:[%s0 + $0x38] sm:$0xff]
    %v24 = vld [vmem:[%s0 + $0x40] sm:$0xff]
    %v25 = vld [vmem:[%s0 + $0x48] sm:$0xff]
    %v26 = vld [vmem:[%s0 + $0x50] sm:$0xff]
    %v27 = vld [vmem:[%s0 + $0x58] sm:$0xff]
    %v28 = vld [vmem:[%s0 + $0x60] sm:$0xff]
    %v29 = vld [vmem:[%s0 + $0x68] sm:$0xff]
    %v30 = vld [vmem:[%s0 + $0x70] sm:$0xff]
    %v31 = vld [vmem:[%s0 + $0x78] sm:$0xff]
    %v32 = vld [vmem:[%s0 + $0x80] sm:$0xff]
    %v33 = vld [vmem:[%s0 + $0x88] sm:$0xff]
    %v34 = vld [vmem:[%s0 + $0x90] sm:$0xff]
    %v35 = vld [vmem:[%s0 + $0x98] sm:$0xff]
    %v36 = vld [vmem:[%s0 + $0xa0] sm:$0xff]
    %v37 = vld [vmem:[%s0 + $0xa8] sm:$0xff]
    %v38 = vld [vmem:[%s0 + $0xb0] sm:$0xff]
    %v39 = vld [vmem:[%s0 + $0xb8] sm:$0xff]
    %v40 = vld [vmem:[%s0 + $0xc0] sm:$0xff]
    %v41 = vld [vmem:[%s0 + $0xc8] sm:$0xff]
    %v42 = vld [vmem:[%s0 + $0xd0] sm:$0xff]
    %v43 = vld [vmem:[%s0 + $0xd8] sm:$0xff]
    %v44 = vld [vmem:[%s0 + $0xe0] sm:$0xff]
    %v45 = vld [vmem:[%s0 + $0xe8] sm:$0xff]
    %v46 = vld [vmem:[%s0 + $0xf0] sm:$0xff]
    %v47 = vld [vmem:[%s0 + $0xf8] sm:$0xff]
    %v48 = vld [vmem:[%s0 + $0x100] sm:$0xff]
    %v49 = vld [vmem:[%s0 + $0x108] sm:$0xff]
    %v50 = vld [vmem:[%s0 + $0x110] sm:$0xff]
    %v51 = vld [vmem:[%s0 + $0x118] sm:$0xff]
    %v52 = vld [vmem:[%s0 + $0x120] sm:$0xff]
    %v53 = vld [vmem:[%s0 + $0x128] sm:$0xff]
    %v54 = vld [vmem:[%s0 + $0x130] sm:$0xff]
    %v55 = vld [vmem:[%s0 + $0x138] sm:$0xff]
    %v56 = vld [vmem:[%s0 + $0x140] sm:$0xff]
    %v57 = vld [vmem:[%s0 + $0x148] sm:$0xff]
    %v58 = vld [vmem:[%s0 + $0x150] sm:$0xff]
    %v59 = vld [vmem:[%s0 + $0x158] sm:$0xff]
    %v60 = vld [vmem:[%s0 + $0x160] sm:$0xff]
    %v61 = vld [vmem:[%s0 + $0x168] sm:$0xff]
    %v62 = vld [vmem:[%s0 + $0x170] sm:$0xff]
    %v63 = vld [vmem:[%s0 + $0x178] sm:$0xff]
    %v64 = vld [vmem:[%s0 + $0x180] sm:$0xff]
    %v65 = vld [vmem:[%s0 + $0x188] sm:$0xff]
    %v66 = vld [vmem:[%s0 + $0x190] sm:$0xff]
    %v67 = vld [vmem:[%s0 + $0x198] sm:$0xff]
    %v68 = vld [vmem:[%s0 + $0x1a0] sm:$0xff]
    %v69 = vld [vmem:[%s0 + $0x1a8] sm:$0xff]
    %v70 = vld [vmem:[%s0 + $0x1b0] sm:$0xff]
    %v71 = vld [vmem:[%s0 + $0x1b8] sm:$0xff]
    %v72 = vld [vmem:[%s0 + $0x1c0] sm:$0xff]
    %v73 = vld [vmem:[%s0 + $0x1c8] sm:$0xff]
    %v74 = vld [vmem:[%s0 + $0x1d0] sm:$0xff]
    %v75 = vld [vmem:[%s0 + $0x1d8] sm:$0xff]
    %v76 = vld [vmem:[%s0 + $0x1e0] sm:$0xff]
    %v77 = vld [vmem:[%s0 + $0x1e8] sm:$0xff]
    %v78 = vld [vmem:[%s0 + $0x1f0] sm:$0xff]
    %v79 = vld [vmem:[%s0 + $0x1f8] sm:$0xff]
    %v80 = vld [vmem:[%s1] sm:$0xf]
    %vm81 = vcmask 31744
    %v83 = vsel %vm81, %v16, 0
    %v86 = vsel %vm81, %v17, 0
    %v89 = vsel %vm81, %v18, 0
    %v92 = vsel %vm81, %v19, 0
    %v95 = vsel %vm81, %v20, 0
    %v98 = vsel %vm81, %v21, 0
    %v101 = vsel %vm81, %v22, 0
    %v104 = vsel %vm81, %v23, 0
    %v107 = vsel %vm81, %v24, 0
    %v110 = vsel %vm81, %v25, 0
    %v113 = vsel %vm81, %v26, 0
    %v116 = vsel %vm81, %v27, 0
    %v119 = vsel %vm81, %v28, 0
    %v122 = vsel %vm81, %v29, 0
    %v125 = vsel %vm81, %v30, 0
    %v128 = vsel %vm81, %v31, 0
    %v131 = vsel %vm81, %v32, 0
    %v134 = vsel %vm81, %v33, 0
    %v137 = vsel %vm81, %v34, 0
    %v140 = vsel %vm81, %v35, 0
    %v143 = vsel %vm81, %v36, 0
    %v146 = vsel %vm81, %v37, 0
    %v149 = vsel %vm81, %v38, 0
    %v152 = vsel %vm81, %v39, 0
    %v155 = vsel %vm81, %v40, 0
    %v158 = vsel %vm81, %v41, 0
    %v161 = vsel %vm81, %v42, 0
    %v164 = vsel %vm81, %v43, 0
    %v167 = vsel %vm81, %v44, 0
    %v170 = vsel %vm81, %v45, 0
    %v173 = vsel %vm81, %v46, 0
    %v176 = vsel %vm81, %v47, 0
    %v179 = vsel %vm81, %v48, 0
    %v182 = vsel %vm81, %v49, 0
    %v185 = vsel %vm81, %v50, 0
    %v188 = vsel %vm81, %v51, 0
    %v191 = vsel %vm81, %v52, 0
    %v194 = vsel %vm81, %v53, 0
    %v197 = vsel %vm81, %v54, 0
    %v200 = vsel %vm81, %v55, 0
    %v203 = vsel %vm81, %v56, 0
    %v206 = vsel %vm81, %v57, 0
    %v209 = vsel %vm81, %v58, 0
    %v212 = vsel %vm81, %v59, 0
    %v215 = vsel %vm81, %v60, 0
    %v218 = vsel %vm81, %v61, 0
    %v221 = vsel %vm81, %v62, 0
    %v224 = vsel %vm81, %v63, 0
    %v227 = vsel %vm81, %v64, 0
    %v230 = vsel %vm81, %v65, 0
    %v233 = vsel %vm81, %v66, 0
    %v236 = vsel %vm81, %v67, 0
    %v239 = vsel %vm81, %v68, 0
    %v242 = vsel %vm81, %v69, 0
    %v245 = vsel %vm81, %v70, 0
    %v248 = vsel %vm81, %v71, 0
    %v251 = vsel %vm81, %v72, 0
    %v254 = vsel %vm81, %v73, 0
    %v257 = vsel %vm81, %v74, 0
    %v260 = vsel %vm81, %v75, 0
    %v263 = vsel %vm81, %v76, 0
    %v266 = vsel %vm81, %v77, 0
    %v269 = vsel %vm81, %v78, 0
    %v272 = vsel %vm81, %v79, 0
    %vm274 = vcmask 1043456
    %v276 = vsel %vm274, %v80, 0
    %278 = vmatpush.msra.mxu0 0.0
    %279 = vmatpush.msra.mxu0 0.0
    %280 = vmatpush.msra.mxu0 0.0
    %281 = vmatpush.msra.mxu0 0.0
    %282 = vmatpush.msra.mxu0 0.0
    %283 = vmatpush.msra.mxu0 0.0
    %284 = vmatpush.msra.mxu0 0.0
    %285 = vmatpush.msra.mxu0 0.0
    %286 = vmatpush.msra.mxu0 0.0
    %287 = vmatpush.msra.mxu0 0.0
    %288 = vmatpush.msra.mxu0 0.0
    %289 = vmatpush.msra.mxu0 0.0
    %290 = vmatpush.msra.mxu0 0.0
    %291 = vmatpush.msra.mxu0 0.0
    %292 = vmatpush.msra.mxu0 0.0
    %293 = vmatpush.msra.mxu0 %v276
    %294 = vmatmul.f32.gmra.mxu0 %v83
    %v295 = vpop.f32.mrf.mxu0
    %v296 = vadd.f32 0.0, %v295
    %297 = vmatmul.f32.gmra.mxu0 %v86
    %v298 = vpop.f32.mrf.mxu0
    %v299 = vadd.f32 0.0, %v298
    %300 = vmatmul.f32.gmra.mxu0 %v89
    %v301 = vpop.f32.mrf.mxu0
    %v302 = vadd.f32 0.0, %v301
    %303 = vmatmul.f32.gmra.mxu0 %v92
    %v304 = vpop.f32.mrf.mxu0
    %v305 = vadd.f32 0.0, %v304
    %306 = vmatmul.f32.gmra.mxu0 %v95
    %v307 = vpop.f32.mrf.mxu0
    %v308 = vadd.f32 0.0, %v307
    %309 = vmatmul.f32.gmra.mxu0 %v98
    %v310 = vpop.f32.mrf.mxu0
    %v311 = vadd.f32 0.0, %v310
    %312 = vmatmul.f32.gmra.mxu0 %v101
    %v313 = vpop.f32.mrf.mxu0
    %v314 = vadd.f32 0.0, %v313
    %315 = vmatmul.f32.gmra.mxu0 %v104
    %v316 = vpop.f32.mrf.mxu0
    %v317 = vadd.f32 0.0, %v316
    %318 = vmatmul.f32.gmra.mxu0 %v107
    %v319 = vpop.f32.mrf.mxu0
    %v320 = vadd.f32 0.0, %v319
    %321 = vmatmul.f32.gmra.mxu0 %v110
    %v322 = vpop.f32.mrf.mxu0
    %v323 = vadd.f32 0.0, %v322
    %324 = vmatmul.f32.gmra.mxu0 %v113
    %v325 = vpop.f32.mrf.mxu0
    %v326 = vadd.f32 0.0, %v325
    %327 = vmatmul.f32.gmra.mxu0 %v116
    %v328 = vpop.f32.mrf.mxu0
    %v329 = vadd.f32 0.0, %v328
    %330 = vmatmul.f32.gmra.mxu0 %v119
    %v331 = vpop.f32.mrf.mxu0
    %v332 = vadd.f32 0.0, %v331
    %333 = vmatmul.f32.gmra.mxu0 %v122
    %v334 = vpop.f32.mrf.mxu0
    %v335 = vadd.f32 0.0, %v334
    %336 = vmatmul.f32.gmra.mxu0 %v125
    %v337 = vpop.f32.mrf.mxu0
    %v338 = vadd.f32 0.0, %v337
    %339 = vmatmul.f32.gmra.mxu0 %v128
    %v340 = vpop.f32.mrf.mxu0
    %v341 = vadd.f32 0.0, %v340
    %342 = vmatmul.f32.gmra.mxu0 %v131
    %v343 = vpop.f32.mrf.mxu0
    %v344 = vadd.f32 0.0, %v343
    %345 = vmatmul.f32.gmra.mxu0 %v134
    %v346 = vpop.f32.mrf.mxu0
    %v347 = vadd.f32 0.0, %v346
    %348 = vmatmul.f32.gmra.mxu0 %v137
    %v349 = vpop.f32.mrf.mxu0
    %v350 = vadd.f32 0.0, %v349
    %351 = vmatmul.f32.gmra.mxu0 %v140
    %v352 = vpop.f32.mrf.mxu0
    %v353 = vadd.f32 0.0, %v352
    %354 = vmatmul.f32.gmra.mxu0 %v143
    %v355 = vpop.f32.mrf.mxu0
    %v356 = vadd.f32 0.0, %v355
    %357 = vmatmul.f32.gmra.mxu0 %v146
    %v358 = vpop.f32.mrf.mxu0
    %v359 = vadd.f32 0.0, %v358
    %360 = vmatmul.f32.gmra.mxu0 %v149
    %v361 = vpop.f32.mrf.mxu0
    %v362 = vadd.f32 0.0, %v361
    %363 = vmatmul.f32.gmra.mxu0 %v152
    %v364 = vpop.f32.mrf.mxu0
    %v365 = vadd.f32 0.0, %v364
    %366 = vmatmul.f32.gmra.mxu0 %v155
    %v367 = vpop.f32.mrf.mxu0
    %v368 = vadd.f32 0.0, %v367
    %369 = vmatmul.f32.gmra.mxu0 %v158
    %v370 = vpop.f32.mrf.mxu0
    %v371 = vadd.f32 0.0, %v370
    %372 = vmatmul.f32.gmra.mxu0 %v161
    %v373 = vpop.f32.mrf.mxu0
    %v374 = vadd.f32 0.0, %v373
    %375 = vmatmul.f32.gmra.mxu0 %v164
    %v376 = vpop.f32.mrf.mxu0
    %v377 = vadd.f32 0.0, %v376
    %378 = vmatmul.f32.gmra.mxu0 %v167
    %v379 = vpop.f32.mrf.mxu0
    %v380 = vadd.f32 0.0, %v379
    %381 = vmatmul.f32.gmra.mxu0 %v170
    %v382 = vpop.f32.mrf.mxu0
    %v383 = vadd.f32 0.0, %v382
    %384 = vmatmul.f32.gmra.mxu0 %v173
    %v385 = vpop.f32.mrf.mxu0
    %v386 = vadd.f32 0.0, %v385
    %387 = vmatmul.f32.gmra.mxu0 %v176
    %v388 = vpop.f32.mrf.mxu0
    %v389 = vadd.f32 0.0, %v388
    %390 = vmatmul.f32.gmra.mxu0 %v179
    %v391 = vpop.f32.mrf.mxu0
    %v392 = vadd.f32 0.0, %v391
    %393 = vmatmul.f32.gmra.mxu0 %v182
    %v394 = vpop.f32.mrf.mxu0
    %v395 = vadd.f32 0.0, %v394
    %396 = vmatmul.f32.gmra.mxu0 %v185
    %v397 = vpop.f32.mrf.mxu0
    %v398 = vadd.f32 0.0, %v397
    %399 = vmatmul.f32.gmra.mxu0 %v188
    %v400 = vpop.f32.mrf.mxu0
    %v401 = vadd.f32 0.0, %v400
    %402 = vmatmul.f32.gmra.mxu0 %v191
    %v403 = vpop.f32.mrf.mxu0
    %v404 = vadd.f32 0.0, %v403
    %405 = vmatmul.f32.gmra.mxu0 %v194
    %v406 = vpop.f32.mrf.mxu0
    %v407 = vadd.f32 0.0, %v406
    %408 = vmatmul.f32.gmra.mxu0 %v197
    %v409 = vpop.f32.mrf.mxu0
    %v410 = vadd.f32 0.0, %v409
    %411 = vmatmul.f32.gmra.mxu0 %v200
    %v412 = vpop.f32.mrf.mxu0
    %v413 = vadd.f32 0.0, %v412
    %414 = vmatmul.f32.gmra.mxu0 %v203
    %v415 = vpop.f32.mrf.mxu0
    %v416 = vadd.f32 0.0, %v415
    %417 = vmatmul.f32.gmra.mxu0 %v206
    %v418 = vpop.f32.mrf.mxu0
    %v419 = vadd.f32 0.0, %v418
    %420 = vmatmul.f32.gmra.mxu0 %v209
    %v421 = vpop.f32.mrf.mxu0
    %v422 = vadd.f32 0.0, %v421
    %423 = vmatmul.f32.gmra.mxu0 %v212
    %v424 = vpop.f32.mrf.mxu0
    %v425 = vadd.f32 0.0, %v424
    %426 = vmatmul.f32.gmra.mxu0 %v215
    %v427 = vpop.f32.mrf.mxu0
    %v428 = vadd.f32 0.0, %v427
    %429 = vmatmul.f32.gmra.mxu0 %v218
    %v430 = vpop.f32.mrf.mxu0
    %v431 = vadd.f32 0.0, %v430
    %432 = vmatmul.f32.gmra.mxu0 %v221
    %v433 = vpop.f32.mrf.mxu0
    %v434 = vadd.f32 0.0, %v433
    %435 = vmatmul.f32.gmra.mxu0 %v224
    %v436 = vpop.f32.mrf.mxu0
    %v437 = vadd.f32 0.0, %v436
    %438 = vmatmul.f32.gmra.mxu0 %v227
    %v439 = vpop.f32.mrf.mxu0
    %v440 = vadd.f32 0.0, %v439
    %441 = vmatmul.f32.gmra.mxu0 %v230
    %v442 = vpop.f32.mrf.mxu0
    %v443 = vadd.f32 0.0, %v442
    %444 = vmatmul.f32.gmra.mxu0 %v233
    %v445 = vpop.f32.mrf.mxu0
    %v446 = vadd.f32 0.0, %v445
    %447 = vmatmul.f32.gmra.mxu0 %v236
    %v448 = vpop.f32.mrf.mxu0
    %v449 = vadd.f32 0.0, %v448
    %450 = vmatmul.f32.gmra.mxu0 %v239
    %v451 = vpop.f32.mrf.mxu0
    %v452 = vadd.f32 0.0, %v451
    %453 = vmatmul.f32.gmra.mxu0 %v242
    %v454 = vpop.f32.mrf.mxu0
    %v455 = vadd.f32 0.0, %v454
    %456 = vmatmul.f32.gmra.mxu0 %v245
    %v457 = vpop.f32.mrf.mxu0
    %v458 = vadd.f32 0.0, %v457
    %459 = vmatmul.f32.gmra.mxu0 %v248
    %v460 = vpop.f32.mrf.mxu0
    %v461 = vadd.f32 0.0, %v460
    %462 = vmatmul.f32.gmra.mxu0 %v251
    %v463 = vpop.f32.mrf.mxu0
    %v464 = vadd.f32 0.0, %v463
    %465 = vmatmul.f32.gmra.mxu0 %v254
    %v466 = vpop.f32.mrf.mxu0
    %v467 = vadd.f32 0.0, %v466
    %468 = vmatmul.f32.gmra.mxu0 %v257
    %v469 = vpop.f32.mrf.mxu0
    %v470 = vadd.f32 0.0, %v469
    %471 = vmatmul.f32.gmra.mxu0 %v260
    %v472 = vpop.f32.mrf.mxu0
    %v473 = vadd.f32 0.0, %v472
    %474 = vmatmul.f32.gmra.mxu0 %v263
    %v475 = vpop.f32.mrf.mxu0
    %v476 = vadd.f32 0.0, %v475
    %477 = vmatmul.f32.gmra.mxu0 %v266
    %v478 = vpop.f32.mrf.mxu0
    %v479 = vadd.f32 0.0, %v478
    %480 = vmatmul.f32.gmra.mxu0 %v269
    %v481 = vpop.f32.mrf.mxu0
    %v482 = vadd.f32 0.0, %v481
    %483 = vmatmul.f32.gmra.mxu0 %v272
    %v484 = vpop.f32.mrf.mxu0
    %v485 = vadd.f32 0.0, %v484
    %486 = vdwg.mxu0
    %vm487 = vcmask 130048
    %488 = vst.msk [vmem:[%s2] sm:$0xff] %vm487, %v296
    %489 = vst.msk [vmem:[%s2 + $0x8] sm:$0xff] %vm487, %v299
    %490 = vst.msk [vmem:[%s2 + $0x10] sm:$0xff] %vm487, %v302
    %491 = vst.msk [vmem:[%s2 + $0x18] sm:$0xff] %vm487, %v305
    %492 = vst.msk [vmem:[%s2 + $0x20] sm:$0xff] %vm487, %v308
    %493 = vst.msk [vmem:[%s2 + $0x28] sm:$0xff] %vm487, %v311
    %494 = vst.msk [vmem:[%s2 + $0x30] sm:$0xff] %vm487, %v314
    %495 = vst.msk [vmem:[%s2 + $0x38] sm:$0xff] %vm487, %v317
    %496 = vst.msk [vmem:[%s2 + $0x40] sm:$0xff] %vm487, %v320
    %497 = vst.msk [vmem:[%s2 + $0x48] sm:$0xff] %vm487, %v323
    %498 = vst.msk [vmem:[%s2 + $0x50] sm:$0xff] %vm487, %v326
    %499 = vst.msk [vmem:[%s2 + $0x58] sm:$0xff] %vm487, %v329
    %500 = vst.msk [vmem:[%s2 + $0x60] sm:$0xff] %vm487, %v332
    %501 = vst.msk [vmem:[%s2 + $0x68] sm:$0xff] %vm487, %v335
    %502 = vst.msk [vmem:[%s2 + $0x70] sm:$0xff] %vm487, %v338
    %503 = vst.msk [vmem:[%s2 + $0x78] sm:$0xff] %vm487, %v341
    %504 = vst.msk [vmem:[%s2 + $0x80] sm:$0xff] %vm487, %v344
    %505 = vst.msk [vmem:[%s2 + $0x88] sm:$0xff] %vm487, %v347
    %506 = vst.msk [vmem:[%s2 + $0x90] sm:$0xff] %vm487, %v350
    %507 = vst.msk [vmem:[%s2 + $0x98] sm:$0xff] %vm487, %v353
    %508 = vst.msk [vmem:[%s2 + $0xa0] sm:$0xff] %vm487, %v356
    %509 = vst.msk [vmem:[%s2 + $0xa8] sm:$0xff] %vm487, %v359
    %510 = vst.msk [vmem:[%s2 + $0xb0] sm:$0xff] %vm487, %v362
    %511 = vst.msk [vmem:[%s2 + $0xb8] sm:$0xff] %vm487, %v365
    %512 = vst.msk [vmem:[%s2 + $0xc0] sm:$0xff] %vm487, %v368
    %513 = vst.msk [vmem:[%s2 + $0xc8] sm:$0xff] %vm487, %v371
    %514 = vst.msk [vmem:[%s2 + $0xd0] sm:$0xff] %vm487, %v374
    %515 = vst.msk [vmem:[%s2 + $0xd8] sm:$0xff] %vm487, %v377
    %516 = vst.msk [vmem:[%s2 + $0xe0] sm:$0xff] %vm487, %v380
    %517 = vst.msk [vmem:[%s2 + $0xe8] sm:$0xff] %vm487, %v383
    %518 = vst.msk [vmem:[%s2 + $0xf0] sm:$0xff] %vm487, %v386
    %519 = vst.msk [vmem:[%s2 + $0xf8] sm:$0xff] %vm487, %v389
    %520 = vst.msk [vmem:[%s2 + $0x100] sm:$0xff] %vm487, %v392
    %521 = vst.msk [vmem:[%s2 + $0x108] sm:$0xff] %vm487, %v395
    %522 = vst.msk [vmem:[%s2 + $0x110] sm:$0xff] %vm487, %v398
    %523 = vst.msk [vmem:[%s2 + $0x118] sm:$0xff] %vm487, %v401
    %524 = vst.msk [vmem:[%s2 + $0x120] sm:$0xff] %vm487, %v404
    %525 = vst.msk [vmem:[%s2 + $0x128] sm:$0xff] %vm487, %v407
    %526 = vst.msk [vmem:[%s2 + $0x130] sm:$0xff] %vm487, %v410
    %527 = vst.msk [vmem:[%s2 + $0x138] sm:$0xff] %vm487, %v413
    %528 = vst.msk [vmem:[%s2 + $0x140] sm:$0xff] %vm487, %v416
    %529 = vst.msk [vmem:[%s2 + $0x148] sm:$0xff] %vm487, %v419
    %530 = vst.msk [vmem:[%s2 + $0x150] sm:$0xff] %vm487, %v422
    %531 = vst.msk [vmem:[%s2 + $0x158] sm:$0xff] %vm487, %v425
    %532 = vst.msk [vmem:[%s2 + $0x160] sm:$0xff] %vm487, %v428
    %533 = vst.msk [vmem:[%s2 + $0x168] sm:$0xff] %vm487, %v431
    %534 = vst.msk [vmem:[%s2 + $0x170] sm:$0xff] %vm487, %v434
    %535 = vst.msk [vmem:[%s2 + $0x178] sm:$0xff] %vm487, %v437
    %536 = vst.msk [vmem:[%s2 + $0x180] sm:$0xff] %vm487, %v440
    %537 = vst.msk [vmem:[%s2 + $0x188] sm:$0xff] %vm487, %v443
    %538 = vst.msk [vmem:[%s2 + $0x190] sm:$0xff] %vm487, %v446
    %539 = vst.msk [vmem:[%s2 + $0x198] sm:$0xff] %vm487, %v449
    %540 = vst.msk [vmem:[%s2 + $0x1a0] sm:$0xff] %vm487, %v452
    %541 = vst.msk [vmem:[%s2 + $0x1a8] sm:$0xff] %vm487, %v455
    %542 = vst.msk [vmem:[%s2 + $0x1b0] sm:$0xff] %vm487, %v458
    %543 = vst.msk [vmem:[%s2 + $0x1b8] sm:$0xff] %vm487, %v461
    %544 = vst.msk [vmem:[%s2 + $0x1c0] sm:$0xff] %vm487, %v464
    %545 = vst.msk [vmem:[%s2 + $0x1c8] sm:$0xff] %vm487, %v467
    %546 = vst.msk [vmem:[%s2 + $0x1d0] sm:$0xff] %vm487, %v470
    %547 = vst.msk [vmem:[%s2 + $0x1d8] sm:$0xff] %vm487, %v473
    %548 = vst.msk [vmem:[%s2 + $0x1e0] sm:$0xff] %vm487, %v476
    %549 = vst.msk [vmem:[%s2 + $0x1e8] sm:$0xff] %vm487, %v479
    %550 = vst.msk [vmem:[%s2 + $0x1f0] sm:$0xff] %vm487, %v482
    %551 = vst.msk [vmem:[%s2 + $0x1f8] sm:$0xff] %vm487, %v485
    %v552 = vsel %vm487, %v296, 0.0
    %v553 = vsel %vm487, %v299, 0.0
    %v554 = vadd.f32 %v552, %v553
    %v555 = vsel %vm487, %v302, 0.0
    %v556 = vadd.f32 %v554, %v555
    %v557 = vsel %vm487, %v305, 0.0
    %v558 = vadd.f32 %v556, %v557
    %v559 = vsel %vm487, %v308, 0.0
    %v560 = vadd.f32 %v558, %v559
    %v561 = vsel %vm487, %v311, 0.0
    %v562 = vadd.f32 %v560, %v561
    %v563 = vsel %vm487, %v314, 0.0
    %v564 = vadd.f32 %v562, %v563
    %v565 = vsel %vm487, %v317, 0.0
    %v566 = vadd.f32 %v564, %v565
    %v567 = vsel %vm487, %v320, 0.0
    %v568 = vadd.f32 %v566, %v567
    %v569 = vsel %vm487, %v323, 0.0
    %v570 = vadd.f32 %v568, %v569
    %v571 = vsel %vm487, %v326, 0.0
    %v572 = vadd.f32 %v570, %v571
    %v573 = vsel %vm487, %v329, 0.0
    %v574 = vadd.f32 %v572, %v573
    %v575 = vsel %vm487, %v332, 0.0
    %v576 = vadd.f32 %v574, %v575
    %v577 = vsel %vm487, %v335, 0.0
    %v578 = vadd.f32 %v576, %v577
    %v579 = vsel %vm487, %v338, 0.0
    %v580 = vadd.f32 %v578, %v579
    %v581 = vsel %vm487, %v341, 0.0
    %v582 = vadd.f32 %v580, %v581
    %v583 = vsel %vm487, %v344, 0.0
    %v584 = vadd.f32 %v582, %v583
    %v585 = vsel %vm487, %v347, 0.0
    %v586 = vadd.f32 %v584, %v585
    %v587 = vsel %vm487, %v350, 0.0
    %v588 = vadd.f32 %v586, %v587
    %v589 = vsel %vm487, %v353, 0.0
    %v590 = vadd.f32 %v588, %v589
    %v591 = vsel %vm487, %v356, 0.0
    %v592 = vadd.f32 %v590, %v591
    %v593 = vsel %vm487, %v359, 0.0
    %v594 = vadd.f32 %v592, %v593
    %v595 = vsel %vm487, %v362, 0.0
    %v596 = vadd.f32 %v594, %v595
    %v597 = vsel %vm487, %v365, 0.0
    %v598 = vadd.f32 %v596, %v597
    %v599 = vsel %vm487, %v368, 0.0
    %v600 = vadd.f32 %v598, %v599
    %v601 = vsel %vm487, %v371, 0.0
    %v602 = vadd.f32 %v600, %v601
    %v603 = vsel %vm487, %v374, 0.0
    %v604 = vadd.f32 %v602, %v603
    %v605 = vsel %vm487, %v377, 0.0
    %v606 = vadd.f32 %v604, %v605
    %v607 = vsel %vm487, %v380, 0.0
    %v608 = vadd.f32 %v606, %v607
    %v609 = vsel %vm487, %v383, 0.0
    %v610 = vadd.f32 %v608, %v609
    %v611 = vsel %vm487, %v386, 0.0
    %v612 = vadd.f32 %v610, %v611
    %v613 = vsel %vm487, %v389, 0.0
    %v614 = vadd.f32 %v612, %v613
    %v615 = vsel %vm487, %v392, 0.0
    %v616 = vadd.f32 %v614, %v615
    %v617 = vsel %vm487, %v395, 0.0
    %v618 = vadd.f32 %v616, %v617
    %v619 = vsel %vm487, %v398, 0.0
    %v620 = vadd.f32 %v618, %v619
    %v621 = vsel %vm487, %v401, 0.0
    %v622 = vadd.f32 %v620, %v621
    %v623 = vsel %vm487, %v404, 0.0
    %v624 = vadd.f32 %v622, %v623
    %v625 = vsel %vm487, %v407, 0.0
    %v626 = vadd.f32 %v624, %v625
    %v627 = vsel %vm487, %v410, 0.0
    %v628 = vadd.f32 %v626, %v627
    %v629 = vsel %vm487, %v413, 0.0
    %v630 = vadd.f32 %v628, %v629
    %v631 = vsel %vm487, %v416, 0.0
    %v632 = vadd.f32 %v630, %v631
    %v633 = vsel %vm487, %v419, 0.0
    %v634 = vadd.f32 %v632, %v633
    %v635 = vsel %vm487, %v422, 0.0
    %v636 = vadd.f32 %v634, %v635
    %v637 = vsel %vm487, %v425, 0.0
    %v638 = vadd.f32 %v636, %v637
    %v639 = vsel %vm487, %v428, 0.0
    %v640 = vadd.f32 %v638, %v639
    %v641 = vsel %vm487, %v431, 0.0
    %v642 = vadd.f32 %v640, %v641
    %v643 = vsel %vm487, %v434, 0.0
    %v644 = vadd.f32 %v642, %v643
    %v645 = vsel %vm487, %v437, 0.0
    %v646 = vadd.f32 %v644, %v645
    %v647 = vsel %vm487, %v440, 0.0
    %v648 = vadd.f32 %v646, %v647
    %v649 = vsel %vm487, %v443, 0.0
    %v650 = vadd.f32 %v648, %v649
    %v651 = vsel %vm487, %v446, 0.0
    %v652 = vadd.f32 %v650, %v651
    %v653 = vsel %vm487, %v449, 0.0
    %v654 = vadd.f32 %v652, %v653
    %v655 = vsel %vm487, %v452, 0.0
    %v656 = vadd.f32 %v654, %v655
    %v657 = vsel %vm487, %v455, 0.0
    %v658 = vadd.f32 %v656, %v657
    %v659 = vsel %vm487, %v458, 0.0
    %v660 = vadd.f32 %v658, %v659
    %v661 = vsel %vm487, %v461, 0.0
    %v662 = vadd.f32 %v660, %v661
    %v663 = vsel %vm487, %v464, 0.0
    %v664 = vadd.f32 %v662, %v663
    %v665 = vsel %vm487, %v467, 0.0
    %v666 = vadd.f32 %v664, %v665
    %v667 = vsel %vm487, %v470, 0.0
    %v668 = vadd.f32 %v666, %v667
    %v669 = vsel %vm487, %v473, 0.0
    %v670 = vadd.f32 %v668, %v669
    %v671 = vsel %vm487, %v476, 0.0
    %v672 = vadd.f32 %v670, %v671
    %v673 = vsel %vm487, %v479, 0.0
    %v674 = vadd.f32 %v672, %v673
    %v675 = vsel %vm487, %v482, 0.0
    %v676 = vadd.f32 %v674, %v675
    %v677 = vsel %vm487, %v485, 0.0
    %v678 = vadd.f32 %v676, %v677
    %v679 = vrot.slane %v678, 4
    %v680 = vadd.f32 %v678, %v679
    %v681 = vrot.slane %v680, 2
    %v682 = vadd.f32 %v680, %v681
    %v683 = vrot.slane %v682, 1
    %v684 = vadd.f32 %v682, %v683
    %vm685 = vcmask 122880
    %686 = vst.msk [vmem:[#allocation2] sm:$0x1] %vm685, %v684
    %v687 = vmul.f32 %v296, %v296
    %v688 = vmul.f32 %v299, %v299
    %v689 = vmul.f32 %v302, %v302
    %v690 = vmul.f32 %v305, %v305
    %v691 = vmul.f32 %v308, %v308
    %v692 = vmul.f32 %v311, %v311
    %v693 = vmul.f32 %v314, %v314
    %v694 = vmul.f32 %v317, %v317
    %v695 = vmul.f32 %v320, %v320
    %v696 = vmul.f32 %v323, %v323
    %v697 = vmul.f32 %v326, %v326
    %v698 = vmul.f32 %v329, %v329
    %v699 = vmul.f32 %v332, %v332
    %v700 = vmul.f32 %v335, %v335
    %v701 = vmul.f32 %v338, %v338
    %v702 = vmul.f32 %v341, %v341
    %v703 = vmul.f32 %v344, %v344
    %v704 = vmul.f32 %v347, %v347
    %v705 = vmul.f32 %v350, %v350
    %v706 = vmul.f32 %v353, %v353
    %v707 = vmul.f32 %v356, %v356
    %v708 = vmul.f32 %v359, %v359
    %v709 = vmul.f32 %v362, %v362
    %v710 = vmul.f32 %v365, %v365
    %v711 = vmul.f32 %v368, %v368
    %v712 = vmul.f32 %v371, %v371
    %v713 = vmul.f32 %v374, %v374
    %v714 = vmul.f32 %v377, %v377
    %v715 = vmul.f32 %v380, %v380
    %v716 = vmul.f32 %v383, %v383
    %v717 = vmul.f32 %v386, %v386
    %v718 = vmul.f32 %v389, %v389
    %v719 = vmul.f32 %v392, %v392
    %v720 = vmul.f32 %v395, %v395
    %v721 = vmul.f32 %v398, %v398
    %v722 = vmul.f32 %v401, %v401
    %v723 = vmul.f32 %v404, %v404
    %v724 = vmul.f32 %v407, %v407
    %v725 = vmul.f32 %v410, %v410
    %v726 = vmul.f32 %v413, %v413
    %v727 = vmul.f32 %v416, %v416
    %v728 = vmul.f32 %v419, %v419
    %v729 = vmul.f32 %v422, %v422
    %v730 = vmul.f32 %v425, %v425
    %v731 = vmul.f32 %v428, %v428
    %v732 = vmul.f32 %v431, %v431
    %v733 = vmul.f32 %v434, %v434
    %v734 = vmul.f32 %v437, %v437
    %v735 = vmul.f32 %v440, %v440
    %v736 = vmul.f32 %v443, %v443
    %v737 = vmul.f32 %v446, %v446
    %v738 = vmul.f32 %v449, %v449
    %v739 = vmul.f32 %v452, %v452
    %v740 = vmul.f32 %v455, %v455
    %v741 = vmul.f32 %v458, %v458
    %v742 = vmul.f32 %v461, %v461
    %v743 = vmul.f32 %v464, %v464
    %v744 = vmul.f32 %v467, %v467
    %v745 = vmul.f32 %v470, %v470
    %v746 = vmul.f32 %v473, %v473
    %v747 = vmul.f32 %v476, %v476
    %v748 = vmul.f32 %v479, %v479
    %v749 = vmul.f32 %v482, %v482
    %v750 = vmul.f32 %v485, %v485
    %v751 = vsel %vm487, %v687, 0.0
    %v752 = vsel %vm487, %v688, 0.0
    %v753 = vadd.f32 %v751, %v752
    %v754 = vsel %vm487, %v689, 0.0
    %v755 = vadd.f32 %v753, %v754
    %v756 = vsel %vm487, %v690, 0.0
    %v757 = vadd.f32 %v755, %v756
    %v758 = vsel %vm487, %v691, 0.0
    %v759 = vadd.f32 %v757, %v758
    %v760 = vsel %vm487, %v692, 0.0
    %v761 = vadd.f32 %v759, %v760
    %v762 = vsel %vm487, %v693, 0.0
    %v763 = vadd.f32 %v761, %v762
    %v764 = vsel %vm487, %v694, 0.0
    %v765 = vadd.f32 %v763, %v764
    %v766 = vsel %vm487, %v695, 0.0
    %v767 = vadd.f32 %v765, %v766
    %v768 = vsel %vm487, %v696, 0.0
    %v769 = vadd.f32 %v767, %v768
    %v770 = vsel %vm487, %v697, 0.0
    %v771 = vadd.f32 %v769, %v770
    %v772 = vsel %vm487, %v698, 0.0
    %v773 = vadd.f32 %v771, %v772
    %v774 = vsel %vm487, %v699, 0.0
    %v775 = vadd.f32 %v773, %v774
    %v776 = vsel %vm487, %v700, 0.0
    %v777 = vadd.f32 %v775, %v776
    %v778 = vsel %vm487, %v701, 0.0
    %v779 = vadd.f32 %v777, %v778
    %v780 = vsel %vm487, %v702, 0.0
    %v781 = vadd.f32 %v779, %v780
    %v782 = vsel %vm487, %v703, 0.0
    %v783 = vadd.f32 %v781, %v782
    %v784 = vsel %vm487, %v704, 0.0
    %v785 = vadd.f32 %v783, %v784
    %v786 = vsel %vm487, %v705, 0.0
    %v787 = vadd.f32 %v785, %v786
    %v788 = vsel %vm487, %v706, 0.0
    %v789 = vadd.f32 %v787, %v788
    %v790 = vsel %vm487, %v707, 0.0
    %v791 = vadd.f32 %v789, %v790
    %v792 = vsel %vm487, %v708, 0.0
    %v793 = vadd.f32 %v791, %v792
    %v794 = vsel %vm487, %v709, 0.0
    %v795 = vadd.f32 %v793, %v794
    %v796 = vsel %vm487, %v710, 0.0
    %v797 = vadd.f32 %v795, %v796
    %v798 = vsel %vm487, %v711, 0.0
    %v799 = vadd.f32 %v797, %v798
    %v800 = vsel %vm487, %v712, 0.0
    %v801 = vadd.f32 %v799, %v800
    %v802 = vsel %vm487, %v713, 0.0
    %v803 = vadd.f32 %v801, %v802
    %v804 = vsel %vm487, %v714, 0.0
    %v805 = vadd.f32 %v803, %v804
    %v806 = vsel %vm487, %v715, 0.0
    %v807 = vadd.f32 %v805, %v806
    %v808 = vsel %vm487, %v716, 0.0
    %v809 = vadd.f32 %v807, %v808
    %v810 = vsel %vm487, %v717, 0.0
    %v811 = vadd.f32 %v809, %v810
    %v812 = vsel %vm487, %v718, 0.0
    %v813 = vadd.f32 %v811, %v812
    %v814 = vsel %vm487, %v719, 0.0
    %v815 = vadd.f32 %v813, %v814
    %v816 = vsel %vm487, %v720, 0.0
    %v817 = vadd.f32 %v815, %v816
    %v818 = vsel %vm487, %v721, 0.0
    %v819 = vadd.f32 %v817, %v818
    %v820 = vsel %vm487, %v722, 0.0
    %v821 = vadd.f32 %v819, %v820
    %v822 = vsel %vm487, %v723, 0.0
    %v823 = vadd.f32 %v821, %v822
    %v824 = vsel %vm487, %v724, 0.0
    %v825 = vadd.f32 %v823, %v824
    %v826 = vsel %vm487, %v725, 0.0
    %v827 = vadd.f32 %v825, %v826
    %v828 = vsel %vm487, %v726, 0.0
    %v829 = vadd.f32 %v827, %v828
    %v830 = vsel %vm487, %v727, 0.0
    %v831 = vadd.f32 %v829, %v830
    %v832 = vsel %vm487, %v728, 0.0
    %v833 = vadd.f32 %v831, %v832
    %v834 = vsel %vm487, %v729, 0.0
    %v835 = vadd.f32 %v833, %v834
    %v836 = vsel %vm487, %v730, 0.0
    %v837 = vadd.f32 %v835, %v836
    %v838 = vsel %vm487, %v731, 0.0
    %v839 = vadd.f32 %v837, %v838
    %v840 = vsel %vm487, %v732, 0.0
    %v841 = vadd.f32 %v839, %v840
    %v842 = vsel %vm487, %v733, 0.0
    %v843 = vadd.f32 %v841, %v842
    %v844 = vsel %vm487, %v734, 0.0
    %v845 = vadd.f32 %v843, %v844
    %v846 = vsel %vm487, %v735, 0.0
    %v847 = vadd.f32 %v845, %v846
    %v848 = vsel %vm487, %v736, 0.0
    %v849 = vadd.f32 %v847, %v848
    %v850 = vsel %vm487, %v737, 0.0
    %v851 = vadd.f32 %v849, %v850
    %v852 = vsel %vm487, %v738, 0.0
    %v853 = vadd.f32 %v851, %v852
    %v854 = vsel %vm487, %v739, 0.0
    %v855 = vadd.f32 %v853, %v854
    %v856 = vsel %vm487, %v740, 0.0
    %v857 = vadd.f32 %v855, %v856
    %v858 = vsel %vm487, %v741, 0.0
    %v859 = vadd.f32 %v857, %v858
    %v860 = vsel %vm487, %v742, 0.0
    %v861 = vadd.f32 %v859, %v860
    %v862 = vsel %vm487, %v743, 0.0
    %v863 = vadd.f32 %v861, %v862
    %v864 = vsel %vm487, %v744, 0.0
    %v865 = vadd.f32 %v863, %v864
    %v866 = vsel %vm487, %v745, 0.0
    %v867 = vadd.f32 %v865, %v866
    %v868 = vsel %vm487, %v746, 0.0
    %v869 = vadd.f32 %v867, %v868
    %v870 = vsel %vm487, %v747, 0.0
    %v871 = vadd.f32 %v869, %v870
    %v872 = vsel %vm487, %v748, 0.0
    %v873 = vadd.f32 %v871, %v872
    %v874 = vsel %vm487, %v749, 0.0
    %v875 = vadd.f32 %v873, %v874
    %v876 = vsel %vm487, %v750, 0.0
    %v877 = vadd.f32 %v875, %v876
    %v878 = vrot.slane %v877, 4
    %v879 = vadd.f32 %v877, %v878
    %v880 = vrot.slane %v879, 2
    %v881 = vadd.f32 %v879, %v880
    %v882 = vrot.slane %v881, 1
    %v883 = vadd.f32 %v881, %v882
    %884 = vst.msk [vmem:[#allocation4] sm:$0x1] %vm685, %v883
    // Predicated region
    $region10: #{tpu_custom_call.1} parent=1 // pred_check
      _
    $region11: #{tpu_custom_call.1} parent=1 // pred_check_branch
      %886 = sbr.rel (0) target = $region13
    $region12: #{tpu_custom_call.1} parent=1 // pred_region
      _
    $region13: #{tpu_custom_call.1} parent=1 // pred_fallthru
      _
    // Predicated region
    $region14: #{tpu_custom_call.1} parent=1 // pred_check
      _
    $region15: #{tpu_custom_call.1} parent=1 // pred_check_branch
      %888 = sbr.rel (0) target = $region17
    $region16: #{tpu_custom_call.1} parent=1 // pred_region
      %890 = vsyncadd [#allocation3], 0
      %s892 = sshll.u32 [#allocation2], 4
      %s893 = int_to_ptr.vmem [resolvable:$true] %s892
      %s894 = sshll.u32 %s3, 4
      %s895 = int_to_ptr.hbm [resolvable:$true] %s894
      %897 = dma.vmem_to_hbm [thread:$0]  %s893, 16, %s895, [#allocation3]
    $region17: #{tpu_custom_call.1} parent=1 // pred_fallthru
      _
    // Predicated region
    $region18: #{tpu_custom_call.1} parent=1 // pred_check
      _
    $region19: #{tpu_custom_call.1} parent=1 // pred_check_branch
      %899 = sbr.rel (0) target = $region21
    $region20: #{tpu_custom_call.1} parent=1 // pred_region
      %901 = vsyncadd [#allocation5], 0
      %s903 = sshll.u32 [#allocation4], 4
      %s904 = int_to_ptr.vmem [resolvable:$true] %s903
      %s905 = sshll.u32 %s4, 4
      %s906 = int_to_ptr.hbm [resolvable:$true] %s905
      %908 = dma.vmem_to_hbm [thread:$0]  %s904, 16, %s906, [#allocation5]
    $region21: #{tpu_custom_call.1} parent=1 // pred_fallthru
      _
    // Predicated region
    $region22: #{tpu_custom_call.1} parent=1 // pred_check
      _
    $region23: #{tpu_custom_call.1} parent=1 // pred_check_branch
      %910 = sbr.rel (0) target = $region25
    $region24: #{tpu_custom_call.1} parent=1 // pred_region
      _
    $region25: #{tpu_custom_call.1} parent=1 // pred_fallthru
      _
    // Predicated region
    $region26: #{tpu_custom_call.1} parent=1 // pred_check
      _
    $region27: #{tpu_custom_call.1} parent=1 // pred_check_branch
      %912 = sbr.rel (0) target = $region29
    $region28: #{tpu_custom_call.1} parent=1 // pred_region
      %914 = dma.done [#allocation3], 16
    $region29: #{tpu_custom_call.1} parent=1 // pred_fallthru
      _
    // Predicated region
    $region30: #{tpu_custom_call.1} parent=1 // pred_check
      _
    $region31: #{tpu_custom_call.1} parent=1 // pred_check_branch
      %916 = sbr.rel (0) target = $region33
    $region32: #{tpu_custom_call.1} parent=1 // pred_region
      %918 = dma.done [#allocation5], 16
    $region33: #{tpu_custom_call.1} parent=1 // pred_fallthru
      _
    %919 = vsyncpa [#allocation3], 1
    %920 = vsyncpa [#allocation5], 1

</llo_original>
